<compile_context>
chip_gen: v7x
topology: tpu7x:2x2x1
jax: 0.10.0
libtpu: 0.0.40
codegen_flags: <defaults>
</compile_context>

<pallas_src>
import math
from functools import partial

import jax
import jax.numpy as jnp
from jax.experimental import pallas as pl
from jax.experimental.pallas import tpu as pltpu

PI = math.pi


# --------------------------------------------------------------------------
# Stage 1: vlin = v @ wlin   (bias-free Linear, hoisted out of the edge loop)
# --------------------------------------------------------------------------
def _vlin_kernel(v_ref, wlin_ref, o_ref):
    o_ref[...] = jnp.dot(v_ref[...], wlin_ref[...],
                         preferred_element_type=jnp.float32).astype(o_ref.dtype)


def _node_projection(v, wlin):
    N, Hin = v.shape
    H = wlin.shape[1]
    # Single full block: N*H is small for typical SchNet node tables; for very
    # large N this kernel would be tiled over the node axis.
    return pl.pallas_call(
        _vlin_kernel,
        out_shape=jax.ShapeDtypeStruct((N, H), jnp.float32),
        grid=(1,),
        in_specs=[pl.BlockSpec((N, Hin), lambda i: (0, 0)),
                  pl.BlockSpec((Hin, H), lambda i: (0, 0))],
        out_specs=pl.BlockSpec((N, H), lambda i: (0, 0)),
    )(v, wlin)


# --------------------------------------------------------------------------
# Stage 2: edge update, tiled over edges.
# --------------------------------------------------------------------------
def _update_e_kernel(cutoff, j_sm_ref, dist_ref, emb_ref,
                     w1_ref, b1_ref, w2_ref, b2_ref, vlin_ref,
                     e_ref, vg_ref):
    # j_sm_ref: (E_pad,) int32 in SMEM (scalar prefetch) -- edge source indices
    # dist_ref: (TE, 1) f32     edge distances (this tile)
    # emb_ref:  (TE, G) f32     gaussian distance embedding (this tile)
    # w1_ref:   (G, H), b1_ref: (1, H)
    # w2_ref:   (H, H), b2_ref: (1, H)
    # vlin_ref: (N, H)  f32     precomputed node projection (resident)
    # e_ref:    (TE, H) f32     output edge features (this tile)
    # vg_ref:   (TE, H) f32     VMEM scratch for gathered node rows
    te = vg_ref.shape[0]
    base = pl.program_id(0) * te

    # Index-driven gather of vlin[j] for this edge tile: O(TE*H), no one-hot.
    def gather_row(t, carry):
        idx = j_sm_ref[base + t]
        vg_ref[pl.ds(t, 1), :] = vlin_ref[pl.ds(idx, 1), :]
        return carry
    jax.lax.fori_loop(0, te, gather_row, 0)

    # MLP on the distance embedding (MXU matmuls, f32 accumulation).
    h = jnp.dot(emb_ref[...], w1_ref[...], preferred_element_type=jnp.float32)
    h = jnp.maximum(h + b1_ref[...], 0.0)
    W = jnp.dot(h, w2_ref[...], preferred_element_type=jnp.float32) + b2_ref[...]

    # Cosine cutoff envelope C = 0.5 * (cos(d * pi / cutoff) + 1), shape (TE, 1).
    C = 0.5 * (jnp.cos(dist_ref[...] * (PI / cutoff)) + 1.0)
    W = W * C

    e_ref[...] = (vg_ref[...] * W).astype(e_ref.dtype)


def update_e_pallas(v, dist, dist_emb, edge_index, params, cutoff, edge_tile=512):
    """params: dict with w1 (G,H), b1 (H,), w2 (H,H), b2 (H,), wlin (H,H),
    all already transposed to (in, out) layout (i.e. PyTorch weight.T)."""
    N, H = v.shape
    E, G = dist_emb.shape

    # ---- Stage 1 (hoisted, grid-invariant): vlin = v @ wlin -----------------
    vlin = _node_projection(v.astype(jnp.float32), params["wlin"].astype(jnp.float32))

    # ---- Stage 2: edge update, tiled over edges -----------------------------
    n_tiles = pl.cdiv(E, edge_tile)
    E_pad = n_tiles * edge_tile
    pad = E_pad - E

    j = jnp.pad(edge_index[0].astype(jnp.int32), (0, pad))          # padded j -> row 0 (valid)
    dist2d = jnp.pad(dist.astype(jnp.float32), (0, pad)).reshape(E_pad, 1)
    emb = jnp.pad(dist_emb.astype(jnp.float32), ((0, pad), (0, 0)))
    b1 = params["b1"].reshape(1, H).astype(jnp.float32)
    b2 = params["b2"].reshape(1, H).astype(jnp.float32)
    w1 = params["w1"].astype(jnp.float32)
    w2 = params["w2"].astype(jnp.float32)

    kernel = partial(_update_e_kernel, float(cutoff))

    e_pad = pl.pallas_call(
        kernel,
        out_shape=jax.ShapeDtypeStruct((E_pad, H), jnp.float32),
        grid_spec=pltpu.PrefetchScalarGridSpec(
            num_scalar_prefetch=1,                      # j -> SMEM
            grid=(n_tiles,),
            in_specs=[
                pl.BlockSpec((edge_tile, 1), lambda i, j_sm: (i, 0)),   # dist
                pl.BlockSpec((edge_tile, G), lambda i, j_sm: (i, 0)),   # dist_emb
                pl.BlockSpec((G, H), lambda i, j_sm: (0, 0)),           # w1
                pl.BlockSpec((1, H), lambda i, j_sm: (0, 0)),           # b1
                pl.BlockSpec((H, H), lambda i, j_sm: (0, 0)),           # w2
                pl.BlockSpec((1, H), lambda i, j_sm: (0, 0)),           # b2
                pl.BlockSpec((N, H), lambda i, j_sm: (0, 0)),           # vlin (resident)
            ],
            out_specs=pl.BlockSpec((edge_tile, H), lambda i, j_sm: (i, 0)),
            scratch_shapes=[pltpu.VMEM((edge_tile, H), jnp.float32)],   # gather buffer
        ),
        compiler_params=pltpu.CompilerParams(
            dimension_semantics=("parallel",),          # v7x: split edge tiles over both TCs
            vmem_limit_bytes=32 * 1024 * 1024),
    )(j, dist2d, emb, w1, b1, w2, b2, vlin)

    return e_pad[:E]


def update_e_reference(v, dist, dist_emb, edge_index, params, cutoff):
    j = edge_index[0]
    C = 0.5 * (jnp.cos(dist * PI / cutoff).reshape(-1, 1) + 1.0)
    h = jnp.maximum(dist_emb @ params["w1"] + params["b1"], 0.0)
    W = (h @ params["w2"] + params["b2"]) * C
    vlin = v @ params["wlin"]
    return vlin[j] * W


if __name__ == "__main__":
    # Small, deterministic problem: 8 nodes, 16 edges, hidden=32, gaussians=16.
    hidden_channels = 32
    num_gaussians = 16
    cutoff = 5.0
    N, E = 8, 16

    key = jax.random.PRNGKey(0)
    k = jax.random.split(key, 9)

    v = jax.random.normal(k[0], (N, hidden_channels), jnp.float32)
    dist = jax.random.uniform(k[1], (E,), jnp.float32, 0.1, cutoff)
    dist_emb = jax.random.normal(k[2], (E, num_gaussians), jnp.float32)
    edge_index = jax.random.randint(k[3], (2, E), 0, N, jnp.int32)

    # Deterministic parameter init ((in, out) layout, i.e. PyTorch weight.T).
    params = {
        "w1": 0.1 * jax.random.normal(k[4], (num_gaussians, hidden_channels), jnp.float32),
        "b1": 0.1 * jax.random.normal(k[5], (hidden_channels,), jnp.float32),
        "w2": 0.1 * jax.random.normal(k[6], (hidden_channels, hidden_channels), jnp.float32),
        "b2": 0.1 * jax.random.normal(k[7], (hidden_channels,), jnp.float32),
        "wlin": 0.1 * jax.random.normal(k[8], (hidden_channels, hidden_channels), jnp.float32),
    }

    e = update_e_pallas(v, dist, dist_emb, edge_index, params, cutoff, edge_tile=256)
    e = jax.block_until_ready(e)

    e_ref = update_e_reference(v, dist, dist_emb, edge_index, params, cutoff)
    assert e.shape == (E, hidden_channels)
    assert jnp.allclose(e, e_ref, atol=1e-5, rtol=1e-5), "mismatch vs JAX reference"

    print("KERNEL_OK")
</pallas_src>

<mosaic_0001>
module attributes {stable_mosaic.version = 11 : i64} {
  func.func @_vlin_kernel(%arg0: i32, %arg1: memref<8x32xf32, #tpu.memory_space<vmem>>, %arg2: memref<32x32xf32, #tpu.memory_space<vmem>>, %arg3: memref<8x32xf32, #tpu.memory_space<vmem>>) attributes {dimension_semantics = [#tpu.dimension_semantics<arbitrary>], iteration_bounds = array<i64: 1>, scalar_prefetch = 0 : i64, scratch_operands = 0 : i64, tpu.core_type = #tpu.core_type<tc>, window_params = [{pipeline_mode = #tpu.pipeline_mode<synchronous>, transform_indices = @transform_0, window_bounds = array<i64: 8, 32>}, {pipeline_mode = #tpu.pipeline_mode<synchronous>, transform_indices = @transform_1, window_bounds = array<i64: 32, 32>}, {pipeline_mode = #tpu.pipeline_mode<synchronous>, transform_indices = @transform_2, window_bounds = array<i64: 8, 32>}]} {
    %c0 = arith.constant 0 : index
    %c0_0 = arith.constant 0 : index
    %0 = vector.load %arg1[%c0, %c0_0] : memref<8x32xf32, #tpu.memory_space<vmem>>, vector<8x32xf32>
    %c0_1 = arith.constant 0 : index
    %c0_2 = arith.constant 0 : index
    %1 = vector.load %arg2[%c0_1, %c0_2] : memref<32x32xf32, #tpu.memory_space<vmem>>, vector<32x32xf32>
    %cst = arith.constant dense<0.000000e+00> : vector<8x32xf32>
    %2 = tpu.matmul %0, %1, %cst {dimension_numbers = #tpu.dot_dimension_numbers<[1], [0], [0], [1], [0, 0, 1, 1], [], []>} : vector<8x32xf32>, vector<32x32xf32>, vector<8x32xf32> -> vector<8x32xf32>
    %c0_3 = arith.constant 0 : index
    %c0_4 = arith.constant 0 : index
    %3 = vector.load %arg3[%c0_3, %c0_4] : memref<8x32xf32, #tpu.memory_space<vmem>>, vector<8x32xf32>
    tpu.vector_store %arg3[%c0_3, %c0_4], %2 {strides = array<i32>} : memref<8x32xf32, #tpu.memory_space<vmem>>, vector<8x32xf32>,
    return
  }
  func.func @transform_0(%arg0: i32) -> (i32, i32) {
    %c0_i32 = arith.constant 0 : i32
    %c0_i32_0 = arith.constant 0 : i32
    %c0_i32_1 = arith.constant 0 : i32
    return %c0_i32, %c0_i32_0 : i32, i32
  }
  func.func @transform_1(%arg0: i32) -> (i32, i32) {
    %c0_i32 = arith.constant 0 : i32
    %c0_i32_0 = arith.constant 0 : i32
    %c0_i32_1 = arith.constant 0 : i32
    return %c0_i32, %c0_i32_0 : i32, i32
  }
  func.func @transform_2(%arg0: i32) -> (i32, i32) {
    %c0_i32 = arith.constant 0 : i32
    %c0_i32_0 = arith.constant 0 : i32
    %c0_i32_1 = arith.constant 0 : i32
    return %c0_i32, %c0_i32_0 : i32, i32
  }
}

</mosaic_0001>

<llo_original>
// kernel: tpu_custom_call.1
$region0: #{tpu_custom_call.1}
  #allocation0 [shape = 'u32[]', space=smem, size = 0x4, offset = 0x4, fixed_abs, tag = 'smem constant byte address 0x4 - core index']
  #allocation1 [shape = 'u32[144,128]{1,0:T(1,128)}', space=vmem, size = 0x12000, scoped, tag = 'internal scratch']
  %s0 = inlined_call_operand.hbm [shape: f32[8,32], index: 0, kind: input, shape index: {}]
  %s1 = inlined_call_operand.hbm [shape: f32[32,32], index: 1, kind: input, shape index: {}]
  %s2 = inlined_call_operand.hbm [shape: f32[8,32], index: 2, kind: output, shape index: {}]
  %s3 = sld [smem:[#allocation0]]
  $region26: #{tpu_custom_call.1} parent=0
    _
  %s5 = ssub.s32 1, %s3
  %s6 = scalar_select 0, %s5, %s3
  $region1: #{tpu_custom_call.1} parent=0
    #allocation2 [shape = 'u8[4096]{0}', space=vmem, size = 0x1000, scoped, tag = 'input window, operand 0, single buffered']
    #allocation3 [shape = 's32[1]{0}', space=sflag, size = 0x4, scoped, tag = 'scoped memory for tpu_custom_call.1']
    #allocation4 [shape = 's32[1]{0}', space=sflag, size = 0x4, scoped, tag = 'scoped memory for tpu_custom_call.1']
    #allocation5 [shape = 'u8[16384]{0}', space=vmem, size = 0x4000, scoped, tag = 'input window, operand 1, single buffered']
    #allocation6 [shape = 's32[1]{0}', space=sflag, size = 0x4, scoped, tag = 'scoped memory for tpu_custom_call.1']
    #allocation7 [shape = 'u8[4096]{0}', space=vmem, size = 0x1000, scoped, tag = 'output window, operand 0, single buffered']
    %7 = vsyncpa [#allocation3], 0
    %8 = vsyncpa [#allocation6], 0
    %9 = vsyncpa [#allocation4], 0
    // Predicated region
    $region2: #{tpu_custom_call.1} parent=1 // pred_check
      _
    $region3: #{tpu_custom_call.1} parent=1 // pred_check_branch
      %11 = sbr.rel (0) target = $region5
    $region4: #{tpu_custom_call.1} parent=1 // pred_region
      %s13 = ssub.s32 128, 128
      %14 = vsyncadd [#allocation3], %s13
      %s16 = sshll.u32 [#allocation2], 4
      %s17 = int_to_ptr.vmem [resolvable:$true] %s16
      %19 = dma.hbm_to_vmem [thread:$0]  %s0, 128, %s17, [#allocation3]
    $region5: #{tpu_custom_call.1} parent=1 // pred_fallthru
      _
    // Predicated region
    $region6: #{tpu_custom_call.1} parent=1 // pred_check
      _
    $region7: #{tpu_custom_call.1} parent=1 // pred_check_branch
      %21 = sbr.rel (0) target = $region9
    $region8: #{tpu_custom_call.1} parent=1 // pred_region
      %s23 = ssub.s32 512, 512
      %24 = vsyncadd [#allocation6], %s23
      %s25 = sshll.u32 [#allocation5], 4
      %s26 = int_to_ptr.vmem [resolvable:$true] %s25
      %31 = dma.hbm_to_vmem [thread:$0]  %s1, 512, %s26, [#allocation6], 128, 128, 8
    $region9: #{tpu_custom_call.1} parent=1 // pred_fallthru
      _
    // Predicated region
    $region10: #{tpu_custom_call.1} parent=1 // pred_check
      _
    $region11: #{tpu_custom_call.1} parent=1 // pred_check_branch
      %33 = sbr.rel (0) target = $region13
    $region12: #{tpu_custom_call.1} parent=1 // pred_region
      %34 = dma.done [#allocation3], 128
    $region13: #{tpu_custom_call.1} parent=1 // pred_fallthru
      _
    // Predicated region
    $region14: #{tpu_custom_call.1} parent=1 // pred_check
      _
    $region15: #{tpu_custom_call.1} parent=1 // pred_check_branch
      %36 = sbr.rel (0) target = $region17
    $region16: #{tpu_custom_call.1} parent=1 // pred_region
      %37 = dma.done [#allocation6], 512
    $region17: #{tpu_custom_call.1} parent=1 // pred_fallthru
      _
    %v38 = vld [vmem:[#allocation2] sm:$0xff]
    %v39 = vld [vmem:[#allocation5] sm:$0xff]
    %v40 = vld [vmem:[#allocation5 + $0x8] sm:$0xff]
    %v41 = vld [vmem:[#allocation5 + $0x10] sm:$0xff]
    %v42 = vld [vmem:[#allocation5 + $0x18] sm:$0xff]
    %vm43 = vcmask 261120
    %v45 = vsel %vm43, %v38, 0
    %47 = vmatprep.subr.mxu0 0.0
    %48 = vmatpush1.msra.mxu0 %v39
    %49 = vmatprep.subr.mxu0 0.0
    %50 = vmatpush1.msra.mxu0 %v40
    %51 = vmatprep.subr.mxu0 0.0
    %52 = vmatpush1.msra.mxu0 %v41
    %53 = vmatprep.subr.mxu0 0.0
    %54 = vmatpush1.msra.mxu0 %v42
    %55 = vmatprep.subr.mxu0 0.0
    %56 = vmatpush1.msra.mxu0 0.0
    %57 = vmatprep.subr.mxu0 0.0
    %58 = vmatpush1.msra.mxu0 0.0
    %59 = vmatprep.subr.mxu0 0.0
    %60 = vmatpush1.msra.mxu0 0.0
    %61 = vmatprep.subr.mxu0 0.0
    %62 = vmatpush1.msra.mxu0 0.0
    %63 = vmatprep.subr.mxu0 0.0
    %64 = vmatpush1.msra.mxu0 0.0
    %65 = vmatprep.subr.mxu0 0.0
    %66 = vmatpush1.msra.mxu0 0.0
    %67 = vmatprep.subr.mxu0 0.0
    %68 = vmatpush1.msra.mxu0 0.0
    %69 = vmatprep.subr.mxu0 0.0
    %70 = vmatpush1.msra.mxu0 0.0
    %71 = vmatprep.subr.mxu0 0.0
    %72 = vmatpush1.msra.mxu0 0.0
    %73 = vmatprep.subr.mxu0 0.0
    %74 = vmatpush1.msra.mxu0 0.0
    %75 = vmatprep.subr.mxu0 0.0
    %76 = vmatpush1.msra.mxu0 0.0
    %77 = vmatprep.subr.mxu0 0.0
    %78 = vmatpush1.msra.mxu0 0.0
    %79 = vmatprep.subr.mxu0 0.0
    %80 = vmatpush1.msra.mxu0 0.0
    %81 = vmatprep.subr.mxu0 0.0
    %82 = vmatpush1.msra.mxu0 0.0
    %83 = vmatprep.subr.mxu0 0.0
    %84 = vmatpush1.msra.mxu0 0.0
    %85 = vmatprep.subr.mxu0 0.0
    %86 = vmatpush1.msra.mxu0 0.0
    %87 = vmatprep.subr.mxu0 0.0
    %88 = vmatpush1.msra.mxu0 0.0
    %89 = vmatprep.subr.mxu0 0.0
    %90 = vmatpush1.msra.mxu0 0.0
    %91 = vmatprep.subr.mxu0 0.0
    %92 = vmatpush1.msra.mxu0 0.0
    %93 = vmatprep.subr.mxu0 0.0
    %94 = vmatpush1.msra.mxu0 0.0
    %95 = vmatprep.subr.mxu0 0.0
    %96 = vmatpush1.msra.mxu0 0.0
    %97 = vmatprep.subr.mxu0 0.0
    %98 = vmatpush1.msra.mxu0 0.0
    %99 = vmatprep.subr.mxu0 0.0
    %100 = vmatpush1.msra.mxu0 0.0
    %101 = vmatprep.subr.mxu0 0.0
    %102 = vmatpush1.msra.mxu0 0.0
    %103 = vmatprep.subr.mxu0 0.0
    %104 = vmatpush1.msra.mxu0 0.0
    %105 = vmatprep.subr.mxu0 0.0
    %106 = vmatpush1.msra.mxu0 0.0
    %107 = vmatprep.subr.mxu0 0.0
    %108 = vmatpush1.msra.mxu0 0.0
    %109 = vmatprep.subr.mxu0 0.0
    %110 = vmatpush1.msra.mxu0 0.0
    %111 = vmatprep.mubr.f32.mxu0 0.0
    %112 = vmatmul.mubr.f32.gmra.mrb[0].mxu0 %v45
    %v113 = vpop.f32.mrb[0].mxu0
    %v114 = vadd.f32 0.0, %v113
    %v115 = vpop.f32.mrb[0].mxu0
    %116 = vdwg.mxu0
    %117 = vst.msk [vmem:[#allocation7] sm:$0xff] %vm43, %v114
    // Predicated region
    $region18: #{tpu_custom_call.1} parent=1 // pred_check
      _
    $region19: #{tpu_custom_call.1} parent=1 // pred_check_branch
      %119 = sbr.rel (0) target = $region21
    $region20: #{tpu_custom_call.1} parent=1 // pred_region
      %s121 = ssub.s32 128, 128
      %122 = vsyncadd [#allocation4], %s121
      %s124 = sshll.u32 [#allocation7], 4
      %s125 = int_to_ptr.vmem [resolvable:$true] %s124
      %127 = dma.vmem_to_hbm [thread:$0]  %s125, 128, %s2, [#allocation4]
    $region21: #{tpu_custom_call.1} parent=1 // pred_fallthru
      _
    // Predicated region
    $region22: #{tpu_custom_call.1} parent=1 // pred_check
      _
    $region23: #{tpu_custom_call.1} parent=1 // pred_check_branch
      %129 = sbr.rel (0) target = $region25
    $region24: #{tpu_custom_call.1} parent=1 // pred_region
      %130 = dma.done [#allocation4], 128
    $region25: #{tpu_custom_call.1} parent=1 // pred_fallthru
      _
    %131 = vsyncpa [#allocation3], 1
    %132 = vsyncpa [#allocation6], 1
    %133 = vsyncpa [#allocation4], 1

</llo_original>
